<compile_context>
chip_gen: v5e
topology: v5e:2x2
jax: 0.10.0
libtpu: 0.0.40
codegen_flags: <defaults>
</compile_context>

<pallas_src>
import jax
import jax.numpy as jnp
from jax.experimental import pallas as pl
from jax.experimental.pallas import tpu as pltpu

_LANES = 1024                            # lane-dense width (multiple of 128)
_TARGET_BLOCK_BYTES = 4 * 1024 * 1024    # ~4 MiB per block buffer
_VMEM_LIMIT_BYTES = 32 * 1024 * 1024     # 2 in + 2 out buffers x 4 MiB = 16 MiB

_COMPILER_PARAMS = pltpu.CompilerParams(
    dimension_semantics=("parallel",),
    vmem_limit_bytes=_VMEM_LIMIT_BYTES,
)


def _h_sigmoid_kernel(x_ref, o_ref):
    x = x_ref[...]
    # relu6(x + 3) / 6 ; true divide kept for exact parity with PyTorch
    # (HBM-bandwidth bound, so the divide costs nothing on the wall clock).
    o_ref[...] = (jnp.clip(x + 3.0, 0.0, 6.0) / 6.0).astype(o_ref.dtype)


def _block_size(total: int, granule: int, max_block: int) -> int:
    """Block length along one axis: a multiple of `granule`, capped at
    `max_block`, and forced to yield >= 2 grid steps whenever total > granule
    (v7x two-TensorCore sharding + DMA/compute overlap)."""
    if total <= granule:
        return total                      # single block == full extent
    half = pl.cdiv(pl.cdiv(total, 2), granule) * granule
    return min(max_block, total, half)


@jax.jit
def h_sigmoid(x: jax.Array) -> jax.Array:
    """Hard sigmoid: relu6(x + 3) / 6, matching the PyTorch module."""
    orig_shape = x.shape
    size = x.size
    if size == 0:
        return x

    # NOTE: floating dtypes expected (as used inside CoordAttention).
    itemsize = jnp.dtype(x.dtype).itemsize
    sublanes = {4: 8, 2: 16, 1: 32}.get(itemsize, 8)

    flat = x.reshape(-1)  # free (bitcast) for contiguous arrays under jit

    if size % _LANES == 0:
        # Lane-dense 2-D view (rows, 1024); partial trailing row-block is
        # handled by Pallas (no pad).
        rows = size // _LANES
        max_rows = max(
            sublanes,
            (_TARGET_BLOCK_BYTES // (itemsize * _LANES)) // sublanes * sublanes,
        )
        block_rows = _block_size(rows, sublanes, max_rows)
        grid = (pl.cdiv(rows, block_rows),)
        out = pl.pallas_call(
            _h_sigmoid_kernel,
            out_shape=jax.ShapeDtypeStruct((rows, _LANES), x.dtype),
            grid=grid,
            in_specs=[pl.BlockSpec((block_rows, _LANES), lambda i: (i, 0))],
            out_specs=pl.BlockSpec((block_rows, _LANES), lambda i: (i, 0)),
            compiler_params=_COMPILER_PARAMS,
        )(flat.reshape(rows, _LANES))
    else:
        # Ragged size: flat 1-D view, block = multiple of one
        # (sublanes x 1024) tile; Pallas masks the partial trailing block.
        tile = sublanes * _LANES
        max_elems = max(tile, (_TARGET_BLOCK_BYTES // itemsize) // tile * tile)
        block = _block_size(size, tile, max_elems)
        grid = (pl.cdiv(size, block),)
        out = pl.pallas_call(
            _h_sigmoid_kernel,
            out_shape=jax.ShapeDtypeStruct((size,), x.dtype),
            grid=grid,
            in_specs=[pl.BlockSpec((block,), lambda i: (i,))],
            out_specs=pl.BlockSpec((block,), lambda i: (i,)),
            compiler_params=_COMPILER_PARAMS,
        )(flat)

    return out.reshape(orig_shape)


if __name__ == "__main__":
    key = jax.random.PRNGKey(0)

    # Small NCHW input consistent with how h_sigmoid is used in CoordAttention.
    x = jax.random.normal(key, (2, 4, 16, 16), dtype=jnp.float32) * 4.0
    y = h_sigmoid(x)
    jax.block_until_ready(y)
    y_ref = jnp.clip(x + 3.0, 0.0, 6.0) / 6.0
    assert y.shape == x.shape and y.dtype == x.dtype
    assert jnp.allclose(y, y_ref, atol=1e-6, rtol=1e-6)

    # Multi-block, lane-aligned case (2-D path, grid > 1).
    x2 = jax.random.normal(jax.random.PRNGKey(1), (8, 32, 64, 64), dtype=jnp.float32) * 4.0
    y2 = h_sigmoid(x2)
    jax.block_until_ready(y2)
    assert jnp.allclose(y2, jnp.clip(x2 + 3.0, 0.0, 6.0) / 6.0, atol=1e-6, rtol=1e-6)

    # Ragged case (1-D path, masked partial trailing block, no pad/slice).
    x3 = jax.random.normal(jax.random.PRNGKey(2), (3, 7, 33, 29), dtype=jnp.float32) * 4.0
    y3 = h_sigmoid(x3)
    jax.block_until_ready(y3)
    assert jnp.allclose(y3, jnp.clip(x3 + 3.0, 0.0, 6.0) / 6.0, atol=1e-6, rtol=1e-6)

    # bf16 exercises the dtype-scaled block sizing (sublanes=16).
    x4 = (jax.random.normal(jax.random.PRNGKey(3), (8, 16, 32, 32), dtype=jnp.float32) * 4.0
          ).astype(jnp.bfloat16)
    y4 = h_sigmoid(x4)
    jax.block_until_ready(y4)
    y4_ref = jnp.clip(x4 + 3.0, 0.0, 6.0) / 6.0
    assert y4.dtype == jnp.bfloat16
    assert jnp.allclose(y4.astype(jnp.float32), y4_ref.astype(jnp.float32),
                        atol=1e-2, rtol=1e-2)

    print("KERNEL_OK")
</pallas_src>

<mosaic_0001>
module attributes {stable_mosaic.version = 11 : i64} {
  func.func @_h_sigmoid_kernel(%arg0: i32, %arg1: memref<2x1024xf32, #tpu.memory_space<vmem>>, %arg2: memref<2x1024xf32, #tpu.memory_space<vmem>>) attributes {dimension_semantics = [#tpu.dimension_semantics<parallel>], iteration_bounds = array<i64: 1>, scalar_prefetch = 0 : i64, scratch_operands = 0 : i64, tpu.core_type = #tpu.core_type<tc>, window_params = [{transform_indices = @transform_0, window_bounds = array<i64: 2, 1024>}, {transform_indices = @transform_1, window_bounds = array<i64: 2, 1024>}]} {
    %c0 = arith.constant 0 : index
    %c0_0 = arith.constant 0 : index
    %0 = vector.load %arg1[%c0, %c0_0] : memref<2x1024xf32, #tpu.memory_space<vmem>>, vector<2x1024xf32>
    %cst = arith.constant 3.000000e+00 : f32
    %1 = vector.broadcast %cst : f32 to vector<2x1024xf32>
    %2 = arith.addf %0, %1 : vector<2x1024xf32>
    %cst_1 = arith.constant 0.000000e+00 : f32
    %cst_2 = arith.constant 6.000000e+00 : f32
    %3 = vector.broadcast %cst_1 : f32 to vector<2x1024xf32>
    %4 = arith.maximumf %3, %2 : vector<2x1024xf32>
    %5 = vector.broadcast %cst_2 : f32 to vector<2x1024xf32>
    %6 = arith.minimumf %5, %4 : vector<2x1024xf32>
    %cst_3 = arith.constant 6.000000e+00 : f32
    %7 = vector.broadcast %cst_3 : f32 to vector<2x1024xf32>
    %8 = arith.divf %6, %7 : vector<2x1024xf32>
    %c0_4 = arith.constant 0 : index
    %c0_5 = arith.constant 0 : index
    %9 = vector.load %arg2[%c0_4, %c0_5] : memref<2x1024xf32, #tpu.memory_space<vmem>>, vector<2x1024xf32>
    tpu.vector_store %arg2[%c0_4, %c0_5], %8 {strides = array<i32>} : memref<2x1024xf32, #tpu.memory_space<vmem>>, vector<2x1024xf32>,
    return
  }
  func.func @transform_0(%arg0: i32) -> (i32, i32) {
    %c0_i32 = arith.constant 0 : i32
    %c0_i32_0 = arith.constant 0 : i32
    return %arg0, %c0_i32 : i32, i32
  }
  func.func @transform_1(%arg0: i32) -> (i32, i32) {
    %c0_i32 = arith.constant 0 : i32
    %c0_i32_0 = arith.constant 0 : i32
    return %arg0, %c0_i32 : i32, i32
  }
}

</mosaic_0001>

<llo_original>
// kernel: h_sigmoid.1
$region0: #{h_sigmoid.1}
  #allocation0 [shape = 'u32[]', space=smem, size = 0x4, offset = 0x4, fixed_abs, tag = 'smem constant byte address 0x4 - core index']
  #allocation1 [shape = 'u32[72,128]{1,0:T(1,128)}', space=vmem, size = 0x9000, scoped, tag = 'internal scratch']
  %s0 = inlined_call_operand.vmem [shape: f32[2,1024], index: 0, kind: input, shape index: {}]
  %s1 = inlined_call_operand.vmem [shape: f32[2,1024], index: 1, kind: output, shape index: {}]
  %s2 = sld [smem:[#allocation0]]
  $region14: #{h_sigmoid.1} parent=0
    _
  %s4 = ssub.s32 1, %s2
  %s5 = scalar_select 0, %s4, %s2
  // Predicated region
  $region2: #{h_sigmoid.1} parent=0 // pred_check
    _
  $region3: #{h_sigmoid.1} parent=0 // pred_check_branch
    %7 = sbr.rel (0) target = $region5
  $region4: #{h_sigmoid.1} parent=0 // pred_region
    _
  $region5: #{h_sigmoid.1} parent=0 // pred_fallthru
    _
  %v8 = vld [vmem:[%s0] sm:$0xff]
  %v9 = vld [vmem:[%s0 + $0x8] sm:$0xff]
  %v10 = vadd.f32 %v8, 3.0
  %v11 = vadd.f32 %v9, 3.0
  %v12 = vmax.f32 %v10, 0.0
  %v13 = vmax.f32 %v11, 0.0
  %v14 = vmin.f32 %v12, 6.0
  %v15 = vmin.f32 %v13, 6.0
  %v16 = vrcp.pop 6.0
  %v17 = vmul.f32 6.0, %v16
  %v18 = vsub.f32 1.0, %v17
  %v19 = vmul.f32 %v16, %v18
  %v20 = vadd.f32 %v16, %v19
  %vm21 = vweird.f32 %v16
  %v22 = vsel %vm21, %v16, %v20
  %v23 = vmul.f32 %v14, %v22
  %v24 = vmul.f32 %v15, %v22
  %25 = vst [vmem:[%s1] sm:$0xff] %v23
  %26 = vst [vmem:[%s1 + $0x8] sm:$0xff] %v24
  // Predicated region
  $region6: #{h_sigmoid.1} parent=0 // pred_check
    _
  $region7: #{h_sigmoid.1} parent=0 // pred_check_branch
    %28 = sbr.rel (0) target = $region9
  $region8: #{h_sigmoid.1} parent=0 // pred_region
    _
  $region9: #{h_sigmoid.1} parent=0 // pred_fallthru
    _
  // Predicated region
  $region10: #{h_sigmoid.1} parent=0 // pred_check
    _
  $region11: #{h_sigmoid.1} parent=0 // pred_check_branch
    %30 = sbr.rel (0) target = $region13
  $region12: #{h_sigmoid.1} parent=0 // pred_region
    _
  $region13: #{h_sigmoid.1} parent=0 // pred_fallthru
    _

</llo_original>
